<compile_context>
chip_gen: v7x
topology: tpu7x:2x2x1
jax: 0.10.0
libtpu: 0.0.40
codegen_flags: <defaults>
</compile_context>

<pallas_src>
import jax
import jax.numpy as jnp
from jax.experimental import pallas as pl
from jax.experimental.pallas import tpu as pltpu

_MiB = 1024 * 1024


# --------------------------------------------------------------------------
# small helpers
# --------------------------------------------------------------------------
def _round_up(n, m):
    return ((n + m - 1) // m) * m


def _divisors(n):
    """All divisors of n, descending."""
    ds = set()
    i = 1
    while i * i <= n:
        if n % i == 0:
            ds.add(i)
            ds.add(n // i)
        i += 1
    return sorted(ds, reverse=True)


def _sublane_multiple(dtype):
    # f32 -> 8, bf16/f16 -> 16, int8/fp8 -> 32 (sub-32-bit packs along sublanes).
    return max(8, 32 // max(1, jnp.dtype(dtype).itemsize))


def _dtype_min(dtype):
    dtype = jnp.dtype(dtype)
    if jnp.issubdtype(dtype, jnp.floating):
        return float("-inf")
    if dtype == jnp.bool_:
        return False
    return int(jnp.iinfo(dtype).min)


def _vmem_defaults():
    """Returns (default block budget, vmem_limit cap), per TPU generation."""
    phys = 128 * _MiB
    try:
        phys = int(pltpu.get_tpu_info().vmem_capacity_bytes)
    except Exception:
        pass
    if phys <= 80 * _MiB:            # v7x-class: 64 MiB per TensorCore
        return 10 * _MiB, 44 * _MiB
    return 16 * _MiB, 64 * _MiB      # v5e / v6e: 128 MiB physical VMEM


# --------------------------------------------------------------------------
# tile planning
# --------------------------------------------------------------------------
def _plan_tiles(B, T, C, dtype, budget):
    """Choose (padded dims, block dims).  Padded dims >= original dims."""
    isz = jnp.dtype(dtype).itemsize
    sub = _sublane_multiple(dtype)

    def footprint(bb, tt, tc):
        # double-buffered input block + (conservatively) double-buffered output.
        return (2 * bb * tt * tc + 2 * bb * tc) * isz

    bb_probe = min(B, sub)
    tt_probe = min(T, sub)

    # ---- lane axis C: prefer a full-C contiguous block; pad only if a large
    #      unaligned full-C block would not fit the budget. --------------------
    Cp = C
    if C % 128 != 0 and C > 128 and footprint(bb_probe, tt_probe, C) > budget:
        Cp = _round_up(C, 128)
    if Cp % 128 == 0:
        cands = [128 * k for k in _divisors(Cp // 128)]
        tc = next((d for d in cands if footprint(bb_probe, tt_probe, d) <= budget), 128)
    else:
        tc = Cp                      # full-extent lane block (C < 128 or unaligned-but-fits)

    # ---- reduction axis T (input sublanes): dtype-aware multiples; pad with
    #      dtype-min only when an unaligned full-T block would not fit. --------
    Tp = T
    if T % sub == 0:
        t_step = sub
    elif T % 8 == 0:
        t_step = 8
    elif T <= 8 or footprint(bb_probe, T, tc) <= budget:
        t_step = None                # full-extent time block
    else:
        Tp = _round_up(T, sub)
        t_step = sub
    if t_step is None:
        tt = Tp
    else:
        cands = [t_step * k for k in _divisors(Tp // t_step)]
        tt = next((d for d in cands if footprint(bb_probe, d, tc) <= budget), t_step)

    # ---- batch axis B (accumulator sublanes): dense multiples of 8 whenever
    #      B allows; full-extent otherwise; pad only as a last resort. ---------
    Bp = B
    if B % sub == 0:
        b_step = sub
    elif B % 8 == 0:
        b_step = 8
    elif B <= 8 or footprint(B, tt, tc) <= budget:
        b_step = None                # full-extent batch block
    else:
        Bp = _round_up(B, 8)
        b_step = 8
    if b_step is None:
        bb = Bp
    else:
        cands = [b_step * k for k in _divisors(Bp // b_step)]
        bb = next((d for d in cands if footprint(d, tt, tc) <= budget), b_step)

    # ---- keep >= 2 parallel grid steps when cheaply possible, so the two
    #      TensorCores of a v7x chip (and megacore sharding) have work. --------
    if (Bp // bb) * (Cp // tc) == 1:
        c_splits = ([128 * k for k in _divisors(Cp // 128) if 128 * k < tc]
                    if Cp % 128 == 0 else [])
        b_splits = ([b_step * k for k in _divisors(Bp // b_step) if b_step * k < bb]
                    if b_step is not None else [])
        if c_splits:
            tc = c_splits[0]         # largest proper divisor (lists are descending)
        elif b_splits:
            bb = b_splits[0]

    return Bp, Tp, Cp, bb, tt, tc


# --------------------------------------------------------------------------
# kernel
# --------------------------------------------------------------------------
def _maxpool_kernel(x_ref, o_ref):
    # x_ref: (bb, tt, tc) input tile.
    # o_ref: (bb, tc) output tile; same block index for every T step, so it is
    #        resident in VMEM and used as the running-max accumulator.
    t = pl.program_id(2)
    tile_max = jnp.max(x_ref[...], axis=1)          # (bb, tc)

    @pl.when(t == 0)
    def _init():
        o_ref[...] = tile_max

    @pl.when(t > 0)
    def _update():
        o_ref[...] = jnp.maximum(o_ref[...], tile_max)


# --------------------------------------------------------------------------
# host-side wrapper
# --------------------------------------------------------------------------
def _max_pool_3d(x, *, vmem_budget_bytes=None):
    """x: (B, T, C) -> (B, C), max over the T axis."""
    B, T, C = x.shape
    dtype = x.dtype
    isz = jnp.dtype(dtype).itemsize

    budget_default, vmem_cap = _vmem_defaults()
    budget = budget_default if vmem_budget_bytes is None else int(vmem_budget_bytes)
    budget = max(1, min(budget, int(vmem_cap * 0.6)))   # keep blocks below the limit

    Bp, Tp, Cp, bb, tt, tc = _plan_tiles(B, T, C, dtype, budget)

    if (Bp, Tp, Cp) != (B, T, C):
        # Pad only when tiling requires it; T is padded with the dtype minimum
        # so the max is unchanged, B/C pad values are sliced off afterwards.
        x = jnp.pad(x, ((0, Bp - B), (0, Tp - T), (0, Cp - C)),
                    constant_values=_dtype_min(dtype))

    in_block_bytes = bb * tt * tc * isz
    out_block_bytes = bb * tc * isz
    n_t_steps = Tp // tt
    # Many small reduction steps expose DMA latency -> request a 3rd buffer.
    use_extra_buffer = n_t_steps >= 4 and in_block_bytes <= 1 * _MiB
    n_in_bufs = 3 if use_extra_buffer else 2

    vmem_limit = int(min(vmem_cap,
                         max(32 * _MiB,
                             n_in_bufs * in_block_bytes + 2 * out_block_bytes + 4 * _MiB)))

    grid = (Bp // bb, Cp // tc, Tp // tt)
    in_block = (bb, tt, tc)
    in_map = lambda b, c, t: (b, t, c)
    out_spec = pl.BlockSpec((bb, tc), lambda b, c, t: (b, c))
    cost = pl.CostEstimate(flops=Bp * Tp * Cp, transcendentals=0,
                           bytes_accessed=(Bp * Tp * Cp + Bp * Cp) * isz)

    def run(in_spec):
        return pl.pallas_call(
            _maxpool_kernel,
            out_shape=jax.ShapeDtypeStruct((Bp, Cp), dtype),
            grid=grid,
            in_specs=[in_spec],
            out_specs=out_spec,
            compiler_params=pltpu.CompilerParams(
                dimension_semantics=("parallel", "parallel", "arbitrary"),
                vmem_limit_bytes=vmem_limit),
            cost_estimate=cost,
        )(x)

    specs = []
    if use_extra_buffer:
        try:
            specs.append(pl.BlockSpec(in_block, in_map, pipeline_mode=pl.Buffered(3)))
        except Exception:
            pass
    specs.append(pl.BlockSpec(in_block, in_map))

    out = None
    for i, spec in enumerate(specs):
        try:
            out = run(spec)
            break
        except Exception:
            if i == len(specs) - 1:
                raise

    if (Bp, Cp) != (B, C):
        out = out[:B, :C]
    return out


def max_pool(x, **kwargs):
    """Pallas equivalent of `torch.max(x, dim=1)[0]` (values only).

    Accepts any rank >= 2; trailing dims after dim 1 are folded into the lane
    axis and restored afterwards.
    """
    B, T = x.shape[0], x.shape[1]
    rest = tuple(x.shape[2:])
    C = 1
    for d in rest:
        C *= d
    out = _max_pool_3d(x.reshape(B, T, max(C, 1)), **kwargs)
    return out.reshape((B,) + rest)


def max_pool_ref(x):
    return jnp.max(x, axis=1)


if __name__ == "__main__":
    key = jax.random.PRNGKey(0)
    tests = [
        # (shape, dtype, kwargs)
        ((2, 8, 32), jnp.float32, {}),                                  # small MIL bag, C < 128 (full-extent lanes)
        ((4, 64, 256), jnp.float32, {}),                                # lane-dense C, single big block
        ((8, 33, 130), jnp.float32, {}),                                # unaligned T & C, full-extent blocks
        ((16, 48, 256), jnp.bfloat16, {}),                              # bf16 -> 16-row sublane packing
        ((3, 50, 256), jnp.float32, {"vmem_budget_bytes": 64 * 1024}),  # forces T padding + multi-step reduction
        ((2, 128, 128), jnp.float32, {"vmem_budget_bytes": 4096}),      # tiny budget -> deep-buffered accumulator path
        ((4, 16), jnp.float32, {}),                                     # rank-2 input (C folds to 1)
    ]
    for i, (shape, dtype, kw) in enumerate(tests):
        key, subkey = jax.random.split(key)
        x = jax.random.normal(subkey, shape, dtype=jnp.float32).astype(dtype)
        out = max_pool(x, **kw)
        jax.block_until_ready(out)
        ref = max_pool_ref(x)
        assert out.shape == ref.shape, f"test {i}: shape {out.shape} vs {ref.shape}"
        assert out.dtype == ref.dtype, f"test {i}: dtype {out.dtype} vs {ref.dtype}"
        assert jnp.array_equal(out, ref), f"test {i}: value mismatch"

    print("KERNEL_OK")
</pallas_src>

<mosaic_0001>
module attributes {stable_mosaic.version = 11 : i64} {
  func.func @_maxpool_kernel(%arg0: i32, %arg1: i32, %arg2: i32, %arg3: memref<2x8x32xf32, #tpu.memory_space<vmem>>, %arg4: memref<2x32xf32, #tpu.memory_space<vmem>>) attributes {dimension_semantics = [#tpu.dimension_semantics<parallel>, #tpu.dimension_semantics<parallel>, #tpu.dimension_semantics<arbitrary>], iteration_bounds = array<i64: 1, 1, 1>, scalar_prefetch = 0 : i64, scratch_operands = 0 : i64, tpu.core_type = #tpu.core_type<tc>, window_params = [{transform_indices = @transform_0, window_bounds = array<i64: 2, 8, 32>}, {transform_indices = @transform_1, window_bounds = array<i64: 2, 32>}]} {
    %c0 = arith.constant 0 : index
    %c0_0 = arith.constant 0 : index
    %c0_1 = arith.constant 0 : index
    %0 = vector.load %arg3[%c0, %c0_0, %c0_1] : memref<2x8x32xf32, #tpu.memory_space<vmem>>, vector<2x8x32xf32>
    %cst = arith.constant dense<0xFF800000> : vector<2x32xf32>
    %1 = vector.multi_reduction <maximumf>, %0, %cst [1] : vector<2x8x32xf32> to vector<2x32xf32>
    %c0_i32 = arith.constant 0 : i32
    %2 = arith.cmpi eq, %arg2, %c0_i32 : i32
    %3 = arith.extui %2 : i1 to i32
    %c0_i32_2 = arith.constant 0 : i32
    %4 = arith.cmpi ne, %3, %c0_i32_2 : i32
    scf.if %4 {
      %c0_5 = arith.constant 0 : index
      %c0_6 = arith.constant 0 : index
      %8 = vector.load %arg4[%c0_5, %c0_6] : memref<2x32xf32, #tpu.memory_space<vmem>>, vector<2x32xf32>
      tpu.vector_store %arg4[%c0_5, %c0_6], %1 {strides = array<i32>} : memref<2x32xf32, #tpu.memory_space<vmem>>, vector<2x32xf32>,
    } else {
    }
    %c0_i32_3 = arith.constant 0 : i32
    %5 = arith.cmpi sgt, %arg2, %c0_i32_3 : i32
    %6 = arith.extui %5 : i1 to i32
    %c0_i32_4 = arith.constant 0 : i32
    %7 = arith.cmpi ne, %6, %c0_i32_4 : i32
    scf.if %7 {
      %c0_5 = arith.constant 0 : index
      %c0_6 = arith.constant 0 : index
      %8 = vector.load %arg4[%c0_5, %c0_6] : memref<2x32xf32, #tpu.memory_space<vmem>>, vector<2x32xf32>
      %9 = arith.maximumf %8, %1 : vector<2x32xf32>
      %c0_7 = arith.constant 0 : index
      %c0_8 = arith.constant 0 : index
      %10 = vector.load %arg4[%c0_7, %c0_8] : memref<2x32xf32, #tpu.memory_space<vmem>>, vector<2x32xf32>
      tpu.vector_store %arg4[%c0_7, %c0_8], %9 {strides = array<i32>} : memref<2x32xf32, #tpu.memory_space<vmem>>, vector<2x32xf32>,
    } else {
    }
    return
  }
  func.func @transform_0(%arg0: i32, %arg1: i32, %arg2: i32) -> (i32, i32, i32) {
    %c0_i32 = arith.constant 0 : i32
    return %arg0, %arg2, %arg1 : i32, i32, i32
  }
  func.func @transform_1(%arg0: i32, %arg1: i32, %arg2: i32) -> (i32, i32) {
    %c0_i32 = arith.constant 0 : i32
    return %arg0, %arg1 : i32, i32
  }
}

</mosaic_0001>

<llo_original>
// kernel: tpu_custom_call.1
$region0: #{tpu_custom_call.1}
  #allocation0 [shape = 'u32[]', space=smem, size = 0x4, offset = 0x4, fixed_abs, tag = 'smem constant byte address 0x4 - core index']
  #allocation1 [shape = 'u32[144,128]{1,0:T(1,128)}', space=vmem, size = 0x12000, scoped, tag = 'internal scratch']
  %s0 = inlined_call_operand.hbm [shape: f32[2,8,32], index: 0, kind: input, shape index: {}]
  %s1 = inlined_call_operand.hbm [shape: f32[2,32], index: 1, kind: output, shape index: {}]
  %s2 = sld [smem:[#allocation0]]
  $region26: #{tpu_custom_call.1} parent=0
    _
  %s4 = ssub.s32 1, %s2
  %s5 = scalar_select 0, %s4, %s2
  $region1: #{tpu_custom_call.1} parent=0
    #allocation2 [shape = 'u8[8192]{0}', space=vmem, size = 0x2000, scoped, tag = 'input window, operand 0, single buffered']
    #allocation3 [shape = 's32[1]{0}', space=sflag, size = 0x4, scoped, tag = 'scoped memory for tpu_custom_call.1']
    #allocation4 [shape = 's32[1]{0}', space=sflag, size = 0x4, scoped, tag = 'scoped memory for tpu_custom_call.1']
    #allocation5 [shape = 'u8[1024]{0}', space=vmem, size = 0x400, scoped, tag = 'output window, operand 0, single buffered']
    %6 = vsyncpa [#allocation3], 0
    %7 = vsyncpa [#allocation4], 0
    // Predicated region
    $region2: #{tpu_custom_call.1} parent=1 // pred_check
      _
    $region3: #{tpu_custom_call.1} parent=1 // pred_check_branch
      %9 = sbr.rel (0) target = $region5
    $region4: #{tpu_custom_call.1} parent=1 // pred_region
      %s11 = ssub.s32 256, 256
      %12 = vsyncadd [#allocation3], %s11
      %s13 = sshll.u32 [#allocation2], 4
      %s14 = int_to_ptr.vmem [resolvable:$true] %s13
      %19 = dma.hbm_to_vmem [thread:$0]  %s0, 256, %s14, [#allocation3], 128, 128, 8
    $region5: #{tpu_custom_call.1} parent=1 // pred_fallthru
      _
    // Predicated region
    $region6: #{tpu_custom_call.1} parent=1 // pred_check
      _
    $region7: #{tpu_custom_call.1} parent=1 // pred_check_branch
      %21 = sbr.rel (0) target = $region9
    $region8: #{tpu_custom_call.1} parent=1 // pred_region
      %22 = dma.done [#allocation3], 256
    $region9: #{tpu_custom_call.1} parent=1 // pred_fallthru
      _
    %v23 = vld [vmem:[#allocation2] sm:$0xff]
    %v24 = vld [vmem:[#allocation2 + $0x8] sm:$0xff]
    %vm25 = vcmask 261120
    %v26 = vsel %vm25, %v23, -inf
    %v27 = vrot.slane %v26, 4
    %v28 = vmax.f32 %v26, %v27
    %v29 = vrot.slane %v28, 2
    %v30 = vmax.f32 %v28, %v29
    %v31 = vrot.slane %v30, 1
    %v32 = vmax.f32 %v30, %v31
    %v33 = vsel %vm25, %v24, -inf
    %v34 = vrot.slane %v33, 4
    %v35 = vmax.f32 %v33, %v34
    %v36 = vrot.slane %v35, 2
    %v37 = vmax.f32 %v35, %v36
    %v38 = vrot.slane %v37, 1
    %v39 = vmax.f32 %v37, %v38
    %p40 = scmp.eq.s32.totalorder 0, 0
    // Predicated region
    $region10: #{tpu_custom_call.1} parent=1 // pred_check
      %p41 = pneg %p40
    $region11: #{tpu_custom_call.1} parent=1 // pred_check_branch
      %43 = sbr.rel (%p41) target = $region13
    $region12: #{tpu_custom_call.1} parent=1 // pred_region
      %vm46 = vcmask 1041409
      %v47 = vsel %vm46, %v39, %v32
      %vm49 = vcmask 254976
      %50 = vst.msk [vmem:[#allocation5] sm:$0x3] %vm49, %v47
    $region13: #{tpu_custom_call.1} parent=1 // pred_fallthru
      _
    %p51 = scmp.gt.s32.totalorder 0, 0
    // Predicated region
    $region14: #{tpu_custom_call.1} parent=1 // pred_check
      %p52 = pneg %p51
    $region15: #{tpu_custom_call.1} parent=1 // pred_check_branch
      %54 = sbr.rel (%p52) target = $region17
    $region16: #{tpu_custom_call.1} parent=1 // pred_region
      %v55 = vld [vmem:[#allocation5] sm:$0x3]
      %vm58 = vcmask 1041409
      %v59 = vsel %vm58, %v39, %v32
      %v61 = vmax.f32 %v55, %v59
      %vm62 = vcmask 254976
      %63 = vst.msk [vmem:[#allocation5] sm:$0x3] %vm62, %v61
    $region17: #{tpu_custom_call.1} parent=1 // pred_fallthru
      _
    // Predicated region
    $region18: #{tpu_custom_call.1} parent=1 // pred_check
      _
    $region19: #{tpu_custom_call.1} parent=1 // pred_check_branch
      %65 = sbr.rel (0) target = $region21
    $region20: #{tpu_custom_call.1} parent=1 // pred_region
      %s67 = ssub.s32 32, 32
      %68 = vsyncadd [#allocation4], %s67
      %s70 = sshll.u32 [#allocation5], 4
      %s71 = int_to_ptr.vmem [resolvable:$true] %s70
      %73 = dma.vmem_to_hbm [thread:$0]  %s71, 32, %s1, [#allocation4]
    $region21: #{tpu_custom_call.1} parent=1 // pred_fallthru
      _
    // Predicated region
    $region22: #{tpu_custom_call.1} parent=1 // pred_check
      _
    $region23: #{tpu_custom_call.1} parent=1 // pred_check_branch
      %75 = sbr.rel (0) target = $region25
    $region24: #{tpu_custom_call.1} parent=1 // pred_region
      %76 = dma.done [#allocation4], 32
    $region25: #{tpu_custom_call.1} parent=1 // pred_fallthru
      _
    %77 = vsyncpa [#allocation3], 1
    %78 = vsyncpa [#allocation4], 1

</llo_original>
